<compile_context>
chip_gen: v7x
topology: tpu7x:2x2x1
jax: 0.10.0
libtpu: 0.0.40
codegen_flags: <defaults>
</compile_context>

<pallas_src>
import functools

import jax
import jax.numpy as jnp
from jax.experimental import pallas as pl
from jax.experimental.pallas import tpu as pltpu


def _ce_label_smooth_kernel(x_ref, t_ref, o_ref, acc_ref, *,
                            epsilon: float, n_total: int, tile_n: int):
    pid = pl.program_id(0)
    last = pl.num_programs(0) - 1

    @pl.when(pid == 0)
    def _init():
        acc_ref[...] = jnp.zeros_like(acc_ref)

    x = x_ref[...].astype(jnp.float32)          # (tile_n, C) logits (upcast in-kernel)
    t = t_ref[...]                               # (tile_n, 1) int32 targets
    tn, c = x.shape

    base = jnp.float32(epsilon / (c - 1.0))
    w_tgt_minus_base = jnp.float32(1.0 - epsilon) - base

    # Row-wise logsumexp pieces; no full log_prob / weight matrices.
    m = jnp.max(x, axis=-1, keepdims=True)                       # XLU reduce
    z = x - m                                                    # VPU
    lse = jnp.log(jnp.sum(jnp.exp(z), axis=-1, keepdims=True))   # EUP + XLU
    sum_z = jnp.sum(z, axis=-1, keepdims=True)                   # XLU

    cls_idx = jax.lax.broadcasted_iota(jnp.int32, (tn, c), 1)
    z_t = jnp.sum(jnp.where(cls_idx == t, z, 0.0), axis=-1, keepdims=True)

    # sum_c(-w_c * log_prob_c) == lse - base*sum_z - (1 - eps - base)*z_t
    per_row = lse - base * sum_z - w_tgt_minus_base * z_t        # (tile_n, 1)

    # Mask padded rows of the (possibly ragged) last tile.
    row = pid * tile_n + jax.lax.broadcasted_iota(jnp.int32, (tn, 1), 0)
    per_row = jnp.where(row < n_total, per_row, 0.0)

    acc_ref[...] += jnp.sum(per_row)

    @pl.when(pid == last)
    def _finalize():
        o_ref[...] = (acc_ref[...] * jnp.float32(1.0 / n_total)).astype(o_ref.dtype)


def ce_label_smooth_loss(logits, targets, epsilon: float = 0.14, tile_n=None):
    """logits: (N, C) float, targets: (N,) int -> scalar float32 loss."""
    n, c = logits.shape
    t2d = targets.astype(jnp.int32).reshape(n, 1)

    itemsize = jnp.dtype(logits.dtype).itemsize
    if tile_n is None:
        # ~4 MiB per logits VMEM buffer (double-buffered by BlockSpec), capped at
        # 1024 rows -> fits every generation's scoped VMEM with headroom.
        tile_n = max(8, min(1024, (4 * 1024 * 1024) // max(c * itemsize, 1)))
    if tile_n >= n:
        tile_n = n                             # single full-extent tile
    else:
        tile_n = max(8, (tile_n // 8) * 8)     # sublane-aligned tile
    grid_n = pl.cdiv(n, tile_n)

    kernel = functools.partial(_ce_label_smooth_kernel,
                               epsilon=float(epsilon), n_total=n, tile_n=tile_n)

    out = pl.pallas_call(
        kernel,
        out_shape=jax.ShapeDtypeStruct((1, 1), jnp.float32),
        grid_spec=pltpu.PrefetchScalarGridSpec(
            num_scalar_prefetch=0,
            grid=(grid_n,),
            in_specs=[
                pl.BlockSpec((tile_n, c), lambda i: (i, 0)),   # logits tile
                pl.BlockSpec((tile_n, 1), lambda i: (i, 0)),   # targets tile
            ],
            out_specs=pl.BlockSpec((1, 1), lambda i: (0, 0)),  # resident scalar
            scratch_shapes=[pltpu.VMEM((1, 1), jnp.float32)],  # accumulator
        ),
        compiler_params=pltpu.CompilerParams(
            dimension_semantics=("arbitrary",),   # batch axis is a reduction
            vmem_limit_bytes=48 * 1024 * 1024,
        ),
    )(logits, t2d)
    return out[0, 0]


def ce_label_smooth_loss_ref(logits, targets, epsilon: float = 0.14):
    """Pure-JAX reference mirroring the PyTorch module."""
    c = logits.shape[-1]
    log_prob = jax.nn.log_softmax(logits.astype(jnp.float32), axis=-1)
    w = jnp.full(logits.shape, epsilon / (c - 1.0), dtype=jnp.float32)
    onehot = jax.nn.one_hot(targets, c, dtype=jnp.float32)
    w = w * (1.0 - onehot) + onehot * (1.0 - epsilon)
    return jnp.mean(jnp.sum(-w * log_prob, axis=-1))


if __name__ == "__main__":
    key = jax.random.PRNGKey(0)
    k1, k2, k3, k4 = jax.random.split(key, 4)
    epsilon = 0.14

    # --- Case 1: module defaults (classes=4), small batch, single tile ---
    batch, classes = 8, 4
    logits = jax.random.normal(k1, (batch, classes), dtype=jnp.float32)
    targets = jax.random.randint(k2, (batch,), 0, classes, dtype=jnp.int32)
    loss = ce_label_smooth_loss(logits, targets, epsilon)
    jax.block_until_ready(loss)
    ref = ce_label_smooth_loss_ref(logits, targets, epsilon)
    assert jnp.allclose(loss, ref, atol=1e-5, rtol=1e-5), (loss, ref)

    # --- Case 2: multi-tile grid with a ragged last tile (exercises masking) ---
    batch2, classes2 = 1000, 256
    logits2 = jax.random.normal(k3, (batch2, classes2), dtype=jnp.float32)
    targets2 = jax.random.randint(k4, (batch2,), 0, classes2, dtype=jnp.int32)
    loss2 = ce_label_smooth_loss(logits2, targets2, epsilon, tile_n=192)
    jax.block_until_ready(loss2)
    ref2 = ce_label_smooth_loss_ref(logits2, targets2, epsilon)
    assert jnp.allclose(loss2, ref2, atol=1e-4, rtol=1e-4), (loss2, ref2)

    # --- Case 3: bf16 logits kept narrow through the DMA, upcast in-kernel ---
    logits3 = logits2.astype(jnp.bfloat16)
    loss3 = ce_label_smooth_loss(logits3, targets2, epsilon, tile_n=192)
    jax.block_until_ready(loss3)
    ref3 = ce_label_smooth_loss_ref(logits3, targets2, epsilon)
    assert jnp.allclose(loss3, ref3, atol=2e-2, rtol=2e-2), (loss3, ref3)

    print("KERNEL_OK")
</pallas_src>

<mosaic_0001>
module attributes {stable_mosaic.version = 11 : i64} {
  func.func @_ce_label_smooth_kernel(%arg0: i32, %arg1: memref<8x4xf32, #tpu.memory_space<vmem>>, %arg2: memref<8x1xi32, #tpu.memory_space<vmem>>, %arg3: memref<1x1xf32, #tpu.memory_space<vmem>>, %arg4: memref<1x1xf32, #tpu.memory_space<vmem>>) attributes {dimension_semantics = [#tpu.dimension_semantics<arbitrary>], iteration_bounds = array<i64: 1>, scalar_prefetch = 0 : i64, scratch_operands = 1 : i64, tpu.core_type = #tpu.core_type<tc>, window_params = [{transform_indices = @transform_0, window_bounds = array<i64: 8, 4>}, {transform_indices = @transform_1, window_bounds = array<i64: 8, 1>}, {pipeline_mode = #tpu.pipeline_mode<synchronous>, transform_indices = @transform_2, window_bounds = array<i64: 1, 1>}]} {
    %c0_i32 = arith.constant 0 : i32
    %0 = arith.cmpi eq, %arg0, %c0_i32 : i32
    %1 = arith.extui %0 : i1 to i32
    %c0_i32_0 = arith.constant 0 : i32
    %2 = arith.cmpi ne, %1, %c0_i32_0 : i32
    scf.if %2 {
      %cst_20 = arith.constant 0.000000e+00 : f32
      %48 = vector.broadcast %cst_20 : f32 to vector<1x1xf32>
      %c0_21 = arith.constant 0 : index
      %c0_22 = arith.constant 0 : index
      %49 = vector.load %arg4[%c0_21, %c0_22] : memref<1x1xf32, #tpu.memory_space<vmem>>, vector<1x1xf32>
      tpu.vector_store %arg4[%c0_21, %c0_22], %48 {strides = array<i32>} : memref<1x1xf32, #tpu.memory_space<vmem>>, vector<1x1xf32>,
    } else {
    }
    %c0 = arith.constant 0 : index
    %c0_1 = arith.constant 0 : index
    %3 = vector.load %arg1[%c0, %c0_1] : memref<8x4xf32, #tpu.memory_space<vmem>>, vector<8x4xf32>
    %c0_2 = arith.constant 0 : index
    %c0_3 = arith.constant 0 : index
    %4 = vector.load %arg2[%c0_2, %c0_3] : memref<8x1xi32, #tpu.memory_space<vmem>>, vector<8x1xi32>
    %cst = arith.constant 8.600000e-01 : f32
    %cst_4 = arith.constant 0.0466666669 : f32
    %5 = arith.subf %cst, %cst_4 : f32
    %cst_5 = arith.constant dense<0xFF800000> : vector<8xf32>
    %6 = vector.multi_reduction <maximumf>, %3, %cst_5 [1] : vector<8x4xf32> to vector<8xf32>
    %7 = vector.shape_cast %6 : vector<8xf32> to vector<8x1xf32>
    %8 = vector.broadcast %7 : vector<8x1xf32> to vector<8x4xf32>
    %9 = arith.subf %3, %8 : vector<8x4xf32>
    %10 = math.exp %9 : vector<8x4xf32>
    %cst_6 = arith.constant dense<0.000000e+00> : vector<8xf32>
    %11 = vector.multi_reduction <add>, %10, %cst_6 [1] : vector<8x4xf32> to vector<8xf32>
    %12 = vector.shape_cast %11 : vector<8xf32> to vector<8x1xf32>
    %13 = math.log %12 : vector<8x1xf32>
    %cst_7 = arith.constant dense<0.000000e+00> : vector<8xf32>
    %14 = vector.multi_reduction <add>, %9, %cst_7 [1] : vector<8x4xf32> to vector<8xf32>
    %15 = vector.shape_cast %14 : vector<8xf32> to vector<8x1xf32>
    %16 = tpu.iota {dimensions = array<i32: 1>} : vector<8x4xi32>
    %17 = vector.broadcast %4 : vector<8x1xi32> to vector<8x4xi32>
    %18 = arith.cmpi eq, %16, %17 : vector<8x4xi32>
    %cst_8 = arith.constant 0.000000e+00 : f32
    %19 = vector.broadcast %cst_8 : f32 to vector<8x4xf32>
    %20 = arith.select %18, %9, %19 : vector<8x4xi1>, vector<8x4xf32>
    %cst_9 = arith.constant dense<0.000000e+00> : vector<8xf32>
    %21 = vector.multi_reduction <add>, %20, %cst_9 [1] : vector<8x4xf32> to vector<8xf32>
    %22 = vector.shape_cast %21 : vector<8xf32> to vector<8x1xf32>
    %cst_10 = arith.constant 0.0466666669 : f32
    %23 = vector.broadcast %cst_10 : f32 to vector<8x1xf32>
    %24 = arith.mulf %23, %15 : vector<8x1xf32>
    %25 = arith.subf %13, %24 : vector<8x1xf32>
    %26 = vector.broadcast %5 : f32 to vector<8x1xf32>
    %27 = arith.mulf %26, %22 : vector<8x1xf32>
    %28 = arith.subf %25, %27 : vector<8x1xf32>
    %c8_i32 = arith.constant 8 : i32
    %29 = arith.muli %arg0, %c8_i32 : i32
    %30 = tpu.iota {dimensions = array<i32: 0>} : vector<8x1xi32>
    %31 = vector.broadcast %29 : i32 to vector<8x1xi32>
    %32 = arith.addi %31, %30 : vector<8x1xi32>
    %c8_i32_11 = arith.constant 8 : i32
    %33 = vector.broadcast %c8_i32_11 : i32 to vector<8x1xi32>
    %34 = arith.cmpi slt, %32, %33 : vector<8x1xi32>
    %cst_12 = arith.constant 0.000000e+00 : f32
    %35 = vector.broadcast %cst_12 : f32 to vector<8x1xf32>
    %36 = arith.select %34, %28, %35 : vector<8x1xi1>, vector<8x1xf32>
    %c0_13 = arith.constant 0 : index
    %c0_14 = arith.constant 0 : index
    %37 = vector.load %arg4[%c0_13, %c0_14] : memref<1x1xf32, #tpu.memory_space<vmem>>, vector<1x1xf32>
    %38 = vector.shape_cast %36 : vector<8x1xf32> to vector<1x8x1xf32>
    %cst_15 = arith.constant dense<0.000000e+00> : vector<1xf32>
    %39 = vector.multi_reduction <add>, %38, %cst_15 [1, 2] : vector<1x8x1xf32> to vector<1xf32>
    %40 = vector.shape_cast %39 : vector<1xf32> to vector<1x1x1xf32>
    %41 = vector.extract %40[0, 0, 0] : f32 from vector<1x1x1xf32>
    %42 = vector.broadcast %41 : f32 to vector<1x1xf32>
    %43 = arith.addf %37, %42 : vector<1x1xf32>
    %c0_16 = arith.constant 0 : index
    %c0_17 = arith.constant 0 : index
    %44 = vector.load %arg4[%c0_16, %c0_17] : memref<1x1xf32, #tpu.memory_space<vmem>>, vector<1x1xf32>
    tpu.vector_store %arg4[%c0_16, %c0_17], %43 {strides = array<i32>} : memref<1x1xf32, #tpu.memory_space<vmem>>, vector<1x1xf32>,
    %c0_i32_18 = arith.constant 0 : i32
    %45 = arith.cmpi eq, %arg0, %c0_i32_18 : i32
    %46 = arith.extui %45 : i1 to i32
    %c0_i32_19 = arith.constant 0 : i32
    %47 = arith.cmpi ne, %46, %c0_i32_19 : i32
    scf.if %47 {
      %c0_20 = arith.constant 0 : index
      %c0_21 = arith.constant 0 : index
      %48 = vector.load %arg4[%c0_20, %c0_21] : memref<1x1xf32, #tpu.memory_space<vmem>>, vector<1x1xf32>
      %cst_22 = arith.constant 1.250000e-01 : f32
      %49 = vector.broadcast %cst_22 : f32 to vector<1x1xf32>
      %50 = arith.mulf %48, %49 : vector<1x1xf32>
      %c0_23 = arith.constant 0 : index
      %c0_24 = arith.constant 0 : index
      %51 = vector.load %arg3[%c0_23, %c0_24] : memref<1x1xf32, #tpu.memory_space<vmem>>, vector<1x1xf32>
      tpu.vector_store %arg3[%c0_23, %c0_24], %50 {strides = array<i32>} : memref<1x1xf32, #tpu.memory_space<vmem>>, vector<1x1xf32>,
    } else {
    }
    return
  }
  func.func @transform_0(%arg0: i32) -> (i32, i32) {
    %c0_i32 = arith.constant 0 : i32
    %c0_i32_0 = arith.constant 0 : i32
    return %arg0, %c0_i32 : i32, i32
  }
  func.func @transform_1(%arg0: i32) -> (i32, i32) {
    %c0_i32 = arith.constant 0 : i32
    %c0_i32_0 = arith.constant 0 : i32
    return %arg0, %c0_i32 : i32, i32
  }
  func.func @transform_2(%arg0: i32) -> (i32, i32) {
    %c0_i32 = arith.constant 0 : i32
    %c0_i32_0 = arith.constant 0 : i32
    %c0_i32_1 = arith.constant 0 : i32
    return %c0_i32, %c0_i32_0 : i32, i32
  }
}

</mosaic_0001>

<llo_original>
// kernel: tpu_custom_call.1
$region0: #{tpu_custom_call.1}
  #allocation0 [shape = 'u32[]', space=smem, size = 0x4, offset = 0x4, fixed_abs, tag = 'smem constant byte address 0x4 - core index']
  #allocation1 [shape = 'u32[144,128]{1,0:T(1,128)}', space=vmem, size = 0x12000, scoped, tag = 'internal scratch']
  #allocation2 [shape = 'f32[1,1]{1,0:T(1,128)}', space=vmem, size = 0x200, scoped, tag = 'scratch operand']
  %s0 = inlined_call_operand.vmem [shape: f32[8,4], index: 0, kind: input, shape index: {}]
  %s1 = inlined_call_operand.vmem [shape: s32[8,1], index: 1, kind: input, shape index: {}]
  %s2 = inlined_call_operand.hbm [shape: f32[1,1], index: 2, kind: output, shape index: {}]
  %s3 = sld [smem:[#allocation0]]
  $region26: #{tpu_custom_call.1} parent=0
    _
  %s5 = ssub.s32 1, %s3
  %s6 = scalar_select 0, %s5, %s3
  $region1: #{tpu_custom_call.1} parent=0
    #allocation3 [shape = 'u8[512]{0}', space=vmem, size = 0x400, scoped, tag = 'output window, operand 0, single buffered']
    #allocation4 [shape = 's32[1]{0}', space=sflag, size = 0x4, scoped, tag = 'scoped memory for tpu_custom_call.1']
    %7 = vsyncpa [#allocation4], 0
    // Predicated region
    $region2: #{tpu_custom_call.1} parent=1 // pred_check
      _
    $region3: #{tpu_custom_call.1} parent=1 // pred_check_branch
      %9 = sbr.rel (0) target = $region5
    $region4: #{tpu_custom_call.1} parent=1 // pred_region
      _
    $region5: #{tpu_custom_call.1} parent=1 // pred_fallthru
      _
    // Predicated region
    $region6: #{tpu_custom_call.1} parent=1 // pred_check
      _
    $region7: #{tpu_custom_call.1} parent=1 // pred_check_branch
      %11 = sbr.rel (0) target = $region9
    $region8: #{tpu_custom_call.1} parent=1 // pred_region
      _
    $region9: #{tpu_custom_call.1} parent=1 // pred_fallthru
      _
    %p12 = scmp.eq.s32.totalorder 0, 0
    // Predicated region
    $region10: #{tpu_custom_call.1} parent=1 // pred_check
      %p13 = pneg %p12
    $region11: #{tpu_custom_call.1} parent=1 // pred_check_branch
      %15 = sbr.rel (%p13) target = $region13
    $region12: #{tpu_custom_call.1} parent=1 // pred_region
      %vm16 = vcmask 0
      %17 = vst.msk [vmem:[#allocation2] sm:$0x1] %vm16, 0.0
    $region13: #{tpu_custom_call.1} parent=1 // pred_fallthru
      _
    %v18 = vld [vmem:[%s0] sm:$0xff]
    %v19 = vld [vmem:[%s1] sm:$0xff]
    %vm20 = vcmask 31744
    %v21 = vsel %vm20, %v18, -inf
    %22 = vmax.xlane.f32.xlu0 %v21
    %v23 = vpop.xlane.xlu0 %22
    %v24 = vsub.f32 %v18, %v23
    %v25 = vmul.f32 %v24, 1.442695
    %v26 = vpow.pop %v25
    %v27 = vsel %vm20, %v26, 0.0
    %28 = vadd.xlane.f32.xlu0 %v27
    %v29 = vpop.xlane.xlu0 %28
    %v30 = vlog2.pop %v29
    %v31 = vmul.f32 %v30, 0.6931472
    %v32 = vsel %vm20, %v24, 0.0
    %33 = vadd.xlane.f32.xlu0 %v32
    %v34 = vpop.xlane.xlu0 %33
    %v35 = vlaneseq
    %v36 = vand.u32 %v35, 127
    %37 = vset.pattern.permute.xlu0 0
    %38 = vperm.xlu0 %37, %v19
    %v39 = vpop.permute.xlu0 %38
    %vm40 = vcmp.eq.s32.totalorder %v36, %v39
    %v41 = vsel %vm40, %v24, 0.0
    %v42 = vsel %vm20, %v41, 0.0
    %43 = vadd.xlane.f32.xlu0 %v42
    %v44 = vpop.xlane.xlu0 %43
    %v45 = vmul.f32 %v34, 0.046666667
    %v46 = vsub.f32 %v31, %v45
    %v47 = vmul.f32 %v44, 0.81333333
    %v48 = vsub.f32 %v46, %v47
    %s49 = smul.u32 0, 8
    %v50 = vlaneseq
    %v51 = vshrl.u32 %v50, 7
    %v52 = vstv %s49
    %v53 = vadd.s32 %v52, %v51
    %vm54 = vcmp.lt.s32.totalorder %v53, 8
    %v55 = vsel %vm54, %v48, 0.0
    %v56 = vld [vmem:[#allocation2] sm:$0x1]
    %vm57 = vcmask 7168
    %v58 = vsel %vm57, %v55, 0.0
    %59 = vadd.xlane.f32.xlu0 %v58
    %v60 = vpop.xlane.xlu0 %59
    %v61 = vrot.slane %v60, 4
    %v62 = vadd.f32 %v60, %v61
    %v63 = vrot.slane %v62, 2
    %v64 = vadd.f32 %v62, %v63
    %v65 = vrot.slane %v64, 1
    %v66 = vadd.f32 %v64, %v65
    %s67 = vtos %v66
    %v68 = vstv %s67
    %v69 = vadd.f32 %v56, %v68
    %vm70 = vcmask 0
    %71 = vst.msk [vmem:[#allocation2] sm:$0x1] %vm70, %v69
    // Predicated region
    $region14: #{tpu_custom_call.1} parent=1 // pred_check
      %p72 = pneg %p12
    $region15: #{tpu_custom_call.1} parent=1 // pred_check_branch
      %74 = sbr.rel (%p72) target = $region17
    $region16: #{tpu_custom_call.1} parent=1 // pred_region
      %v75 = vld [vmem:[#allocation2] sm:$0x1]
      %v76 = vmul.f32 %v75, 0.125
      %77 = vst.msk [vmem:[#allocation3] sm:$0x1] %vm70, %v76
    $region17: #{tpu_custom_call.1} parent=1 // pred_fallthru
      _
    // Predicated region
    $region18: #{tpu_custom_call.1} parent=1 // pred_check
      _
    $region19: #{tpu_custom_call.1} parent=1 // pred_check_branch
      %79 = sbr.rel (0) target = $region21
    $region20: #{tpu_custom_call.1} parent=1 // pred_region
      %s81 = ssub.s32 16, 16
      %82 = vsyncadd [#allocation4], %s81
      %s84 = sshll.u32 [#allocation3], 4
      %s85 = int_to_ptr.vmem [resolvable:$true] %s84
      %87 = dma.vmem_to_hbm [thread:$0]  %s85, 16, %s2, [#allocation4]
    $region21: #{tpu_custom_call.1} parent=1 // pred_fallthru
      _
    // Predicated region
    $region22: #{tpu_custom_call.1} parent=1 // pred_check
      _
    $region23: #{tpu_custom_call.1} parent=1 // pred_check_branch
      %89 = sbr.rel (0) target = $region25
    $region24: #{tpu_custom_call.1} parent=1 // pred_region
      %90 = dma.done [#allocation4], 16
    $region25: #{tpu_custom_call.1} parent=1 // pred_fallthru
      _
    %91 = vsyncpa [#allocation4], 1

</llo_original>
